<compile_context>
chip_gen: v6e
topology: v6e:2x2x1
jax: 0.10.0
libtpu: 0.0.40
codegen_flags: <defaults>
</compile_context>

<pallas_src>
import functools
import math

import jax
import jax.numpy as jnp
from jax.experimental import pallas as pl

_HALF_LOG_2PI = 0.5 * math.log(2.0 * math.pi)
_LOG_10 = math.log(10.0)

ROWS, COLS = 8, 128  # one f32 vreg tile per variational parameter


def _make_fused_kernel(supports):
    """One fused kernel body covering every variational parameter.

    Per parameter (all inside a single pallas_call, fully unrolled):
      dist() params -> reparameterized sample (eps passed in) ->
      support transform -> Normal(loc, scale).log_prob(real) accumulated into
      one (8,128) VPU accumulator; a single XLU reduction at the end.
    """
    n = len(supports)

    def kernel(vp_ref, noise_ref, params_ref, logq_ref):
        # vp_ref:     (n, 2, ROWS, COLS)  f32  VMEM
        # noise_ref:  (n, ROWS, COLS)     f32  VMEM
        # params_ref: (n, ROWS, COLS)     f32  VMEM
        # logq_ref:   (1, 1)              f32  VMEM
        acc = jnp.zeros((ROWS, COLS), jnp.float32)

        for i, support in enumerate(supports):
            m = vp_ref[i, 0]          # zero-cost views of the stacked input
            log_s = vp_ref[i, 1]
            noise = noise_ref[i]

            # ModelParam.dist()
            if support in ("simplex", "unit_interval"):
                loc = jax.nn.sigmoid(m) * 20.0 - 10.0
                # log(scale) = log(10) + log_sigmoid(log_s); scale derived from it
                # -> one transcendental chain instead of sigmoid + log, and no
                # 1/scale hazard when sigmoid(log_s) underflows.
                log_scale = _LOG_10 + jax.nn.log_sigmoid(log_s)
                scale = jnp.exp(log_scale)
            else:  # 'real' / 'positive'
                loc = m
                log_scale = log_s
                scale = jnp.exp(log_s)

            # ModelParam.real_sample(): reparameterized, eps drawn outside
            # (pltpu PRNG has no CPU/interpret lowering).
            real = loc + scale * noise

            # ModelParam.transform()
            if support == "unit_interval":
                params_ref[i] = jax.nn.sigmoid(real)
            elif support == "positive":
                params_ref[i] = jnp.exp(real)
            elif support == "real":
                params_ref[i] = real
            else:
                # TODO(synk): StickBreakingTransform ('simplex') has no clean
                # in-kernel equivalent (sequential stick-breaking cumprod);
                # identity fallback, not exercised by the example parameters.
                params_ref[i] = real

            # ModelParam.log_q(): Normal(loc, scale).log_prob(real).sum()
            # With real = loc + scale*noise, z == noise exactly (no divide).
            # The -0.5*log(2*pi) constant is hoisted out of the loop.
            acc = acc + (-0.5) * (noise * noise) - log_scale

        total = jnp.sum(acc, keepdims=True)            # single (8,128)->(1,1) reduce
        logq_ref[...] = total - jnp.float32(n * ROWS * COLS * _HALF_LOG_2PI)

    return kernel


@functools.partial(jax.jit, static_argnums=0)
def _vi_fused_forward(supports, key, vp_all):
    """Single dispatch: draw batched eps, run fused kernel, return (params, log_q)."""
    n, _, rows, cols = vp_all.shape
    # One batched draw for every parameter (reparameterization noise).
    noise = jax.random.normal(key, (n, rows, cols), dtype=jnp.float32)

    params_all, log_q = pl.pallas_call(
        _make_fused_kernel(supports),
        out_shape=(
            jax.ShapeDtypeStruct((n, rows, cols), jnp.float32),
            jax.ShapeDtypeStruct((1, 1), jnp.float32),
        ),
        in_specs=[
            pl.BlockSpec((n, 2, rows, cols), lambda: (0, 0, 0, 0)),
            pl.BlockSpec((n, rows, cols), lambda: (0, 0, 0)),
        ],
        out_specs=(
            pl.BlockSpec((n, rows, cols), lambda: (0, 0, 0)),
            pl.BlockSpec((1, 1), lambda: (0, 0)),
        ),
    )(vp_all, noise)
    return params_all, log_q[0, 0]


def make_model_params(key):
    """Deterministic stand-ins for VI.mp, stored PRE-STACKED.

    Matches ModelParam.__init__: m ~ randn(size), log_s ~ randn(size),
    vp = stack([m, log_s]).  All parameters are stacked once at init into a
    single (n, 2, ROWS, COLS) array so the per-forward wrapper does no concat.
    """
    names = ("mu", "sig2", "eps")
    supports = ("real", "positive", "unit_interval")
    vps = []
    for _ in names:
        key, k_m, k_s = jax.random.split(key, 3)
        m = jax.random.normal(k_m, (ROWS, COLS), dtype=jnp.float32)
        log_s = jax.random.normal(k_s, (ROWS, COLS), dtype=jnp.float32)
        vps.append(jnp.stack([m, log_s]))          # ModelParam.vp
    vp_all = jnp.stack(vps)                        # (n, 2, ROWS, COLS)
    return names, supports, vp_all, key


def vi_forward(names, supports, vp_all, idx, key):
    """VI.forward(idx): elbo = loglike + log_prior - log_q (one fused call)."""
    del idx  # only consumed by the abstract loglike()
    params_all, total_log_q = _vi_fused_forward(supports, key, vp_all)
    params = {name: params_all[i] for i, name in enumerate(names)}

    # TODO(synk): loglike() and log_prior() are abstract on VI; no concrete
    # definition exists in the reference, so they contribute 0 to the ELBO here.
    loglike = jnp.float32(0.0)
    log_prior = jnp.float32(0.0)
    elbo = loglike + log_prior - total_log_q
    return elbo, params


if __name__ == "__main__":
    key = jax.random.PRNGKey(0)
    names, supports, vp_all, key = make_model_params(key)
    idx = jnp.arange(16, dtype=jnp.int32)  # minibatch indices (unused by abstract loglike)
    key, sub = jax.random.split(key)
    elbo, params = vi_forward(names, supports, vp_all, idx, sub)
    elbo = jax.block_until_ready(elbo)
    for p in params.values():
        jax.block_until_ready(p)
    assert jnp.isfinite(elbo)
    print("KERNEL_OK")
</pallas_src>

<mosaic_0001>
module attributes {stable_mosaic.version = 11 : i64} {
  func.func @kernel(%arg0: memref<3x2x8x128xf32, #tpu.memory_space<vmem>>, %arg1: memref<3x8x128xf32, #tpu.memory_space<vmem>>, %arg2: memref<3x8x128xf32, #tpu.memory_space<vmem>>, %arg3: memref<1x1xf32, #tpu.memory_space<vmem>>) attributes {dimension_semantics = [], scalar_prefetch = 0 : i64, scratch_operands = 0 : i64, tpu.core_type = #tpu.core_type<tc>} {
    %cst = arith.constant 0.000000e+00 : f32
    %0 = vector.broadcast %cst : f32 to vector<8x128xf32>
    %c0 = arith.constant 0 : index
    %c0_0 = arith.constant 0 : index
    %c0_1 = arith.constant 0 : index
    %c0_2 = arith.constant 0 : index
    %1 = vector.load %arg0[%c0, %c0_0, %c0_1, %c0_2] : memref<3x2x8x128xf32, #tpu.memory_space<vmem>>, vector<1x1x8x128xf32>
    %2 = vector.shape_cast %1 : vector<1x1x8x128xf32> to vector<8x128xf32>
    %c0_3 = arith.constant 0 : index
    %c1 = arith.constant 1 : index
    %c0_4 = arith.constant 0 : index
    %c0_5 = arith.constant 0 : index
    %3 = vector.load %arg0[%c0_3, %c1, %c0_4, %c0_5] : memref<3x2x8x128xf32, #tpu.memory_space<vmem>>, vector<1x1x8x128xf32>
    %4 = vector.shape_cast %3 : vector<1x1x8x128xf32> to vector<8x128xf32>
    %c0_6 = arith.constant 0 : index
    %c0_7 = arith.constant 0 : index
    %c0_8 = arith.constant 0 : index
    %5 = vector.load %arg1[%c0_6, %c0_7, %c0_8] : memref<3x8x128xf32, #tpu.memory_space<vmem>>, vector<1x8x128xf32>
    %6 = vector.shape_cast %5 : vector<1x8x128xf32> to vector<8x128xf32>
    %7 = math.exp %4 : vector<8x128xf32>
    %8 = arith.mulf %7, %6 : vector<8x128xf32>
    %9 = arith.addf %2, %8 : vector<8x128xf32>
    %c0_9 = arith.constant 0 : index
    %c0_10 = arith.constant 0 : index
    %c0_11 = arith.constant 0 : index
    %10 = vector.load %arg2[%c0_9, %c0_10, %c0_11] : memref<3x8x128xf32, #tpu.memory_space<vmem>>, vector<1x8x128xf32>
    %11 = vector.shape_cast %10 : vector<1x8x128xf32> to vector<8x128xf32>
    %12 = vector.shape_cast %9 : vector<8x128xf32> to vector<1x8x128xf32>
    tpu.vector_store %arg2[%c0_9, %c0_10, %c0_11], %12 {strides = array<i32>} : memref<3x8x128xf32, #tpu.memory_space<vmem>>, vector<1x8x128xf32>,
    %13 = arith.mulf %6, %6 : vector<8x128xf32>
    %cst_12 = arith.constant -5.000000e-01 : f32
    %14 = vector.broadcast %cst_12 : f32 to vector<8x128xf32>
    %15 = arith.mulf %14, %13 : vector<8x128xf32>
    %16 = arith.addf %0, %15 : vector<8x128xf32>
    %17 = arith.subf %16, %4 : vector<8x128xf32>
    %c1_13 = arith.constant 1 : index
    %c0_14 = arith.constant 0 : index
    %c0_15 = arith.constant 0 : index
    %c0_16 = arith.constant 0 : index
    %18 = vector.load %arg0[%c1_13, %c0_14, %c0_15, %c0_16] : memref<3x2x8x128xf32, #tpu.memory_space<vmem>>, vector<1x1x8x128xf32>
    %19 = vector.shape_cast %18 : vector<1x1x8x128xf32> to vector<8x128xf32>
    %c1_17 = arith.constant 1 : index
    %c1_18 = arith.constant 1 : index
    %c0_19 = arith.constant 0 : index
    %c0_20 = arith.constant 0 : index
    %20 = vector.load %arg0[%c1_17, %c1_18, %c0_19, %c0_20] : memref<3x2x8x128xf32, #tpu.memory_space<vmem>>, vector<1x1x8x128xf32>
    %21 = vector.shape_cast %20 : vector<1x1x8x128xf32> to vector<8x128xf32>
    %c1_21 = arith.constant 1 : index
    %c0_22 = arith.constant 0 : index
    %c0_23 = arith.constant 0 : index
    %22 = vector.load %arg1[%c1_21, %c0_22, %c0_23] : memref<3x8x128xf32, #tpu.memory_space<vmem>>, vector<1x8x128xf32>
    %23 = vector.shape_cast %22 : vector<1x8x128xf32> to vector<8x128xf32>
    %24 = math.exp %21 : vector<8x128xf32>
    %25 = arith.mulf %24, %23 : vector<8x128xf32>
    %26 = arith.addf %19, %25 : vector<8x128xf32>
    %27 = math.exp %26 : vector<8x128xf32>
    %c1_24 = arith.constant 1 : index
    %c0_25 = arith.constant 0 : index
    %c0_26 = arith.constant 0 : index
    %28 = vector.load %arg2[%c1_24, %c0_25, %c0_26] : memref<3x8x128xf32, #tpu.memory_space<vmem>>, vector<1x8x128xf32>
    %29 = vector.shape_cast %28 : vector<1x8x128xf32> to vector<8x128xf32>
    %30 = vector.shape_cast %27 : vector<8x128xf32> to vector<1x8x128xf32>
    tpu.vector_store %arg2[%c1_24, %c0_25, %c0_26], %30 {strides = array<i32>} : memref<3x8x128xf32, #tpu.memory_space<vmem>>, vector<1x8x128xf32>,
    %31 = arith.mulf %23, %23 : vector<8x128xf32>
    %cst_27 = arith.constant -5.000000e-01 : f32
    %32 = vector.broadcast %cst_27 : f32 to vector<8x128xf32>
    %33 = arith.mulf %32, %31 : vector<8x128xf32>
    %34 = arith.addf %17, %33 : vector<8x128xf32>
    %35 = arith.subf %34, %21 : vector<8x128xf32>
    %c2 = arith.constant 2 : index
    %c0_28 = arith.constant 0 : index
    %c0_29 = arith.constant 0 : index
    %c0_30 = arith.constant 0 : index
    %36 = vector.load %arg0[%c2, %c0_28, %c0_29, %c0_30] : memref<3x2x8x128xf32, #tpu.memory_space<vmem>>, vector<1x1x8x128xf32>
    %37 = vector.shape_cast %36 : vector<1x1x8x128xf32> to vector<8x128xf32>
    %c2_31 = arith.constant 2 : index
    %c1_32 = arith.constant 1 : index
    %c0_33 = arith.constant 0 : index
    %c0_34 = arith.constant 0 : index
    %38 = vector.load %arg0[%c2_31, %c1_32, %c0_33, %c0_34] : memref<3x2x8x128xf32, #tpu.memory_space<vmem>>, vector<1x1x8x128xf32>
    %39 = vector.shape_cast %38 : vector<1x1x8x128xf32> to vector<8x128xf32>
    %c2_35 = arith.constant 2 : index
    %c0_36 = arith.constant 0 : index
    %c0_37 = arith.constant 0 : index
    %40 = vector.load %arg1[%c2_35, %c0_36, %c0_37] : memref<3x8x128xf32, #tpu.memory_space<vmem>>, vector<1x8x128xf32>
    %41 = vector.shape_cast %40 : vector<1x8x128xf32> to vector<8x128xf32>
    %42 = arith.negf %37 : vector<8x128xf32>
    %43 = math.exp %42 : vector<8x128xf32>
    %cst_38 = arith.constant 1.000000e+00 : f32
    %44 = vector.broadcast %cst_38 : f32 to vector<8x128xf32>
    %45 = arith.addf %44, %43 : vector<8x128xf32>
    %46 = arith.divf %44, %45 : vector<8x128xf32>
    %cst_39 = arith.constant 2.000000e+01 : f32
    %47 = vector.broadcast %cst_39 : f32 to vector<8x128xf32>
    %48 = arith.mulf %46, %47 : vector<8x128xf32>
    %cst_40 = arith.constant 1.000000e+01 : f32
    %49 = vector.broadcast %cst_40 : f32 to vector<8x128xf32>
    %50 = arith.subf %48, %49 : vector<8x128xf32>
    %cst_41 = arith.constant 0.000000e+00 : f32
    %51 = vector.broadcast %cst_41 : f32 to vector<8x128xf32>
    %52 = arith.subf %51, %39 : vector<8x128xf32>
    %cst_42 = arith.constant 0.000000e+00 : f32
    %53 = vector.broadcast %cst_42 : f32 to vector<8x128xf32>
    %54 = arith.maximumf %52, %53 : vector<8x128xf32>
    %55 = vector.broadcast %cst_42 : f32 to vector<8x128xf32>
    %56 = arith.subf %52, %55 : vector<8x128xf32>
    %57 = arith.cmpf one, %56, %56 : vector<8x128xf32>
    %58 = vector.broadcast %cst_42 : f32 to vector<8x128xf32>
    %59 = arith.addf %52, %58 : vector<8x128xf32>
    %60 = math.absf %56 : vector<8x128xf32>
    %cst_43 = arith.constant 0.000000e+00 : f32
    %61 = vector.broadcast %cst_43 : f32 to vector<8x128xf32>
    %62 = arith.subf %61, %60 : vector<8x128xf32>
    %63 = math.exp %62 : vector<8x128xf32>
    %64 = math.log1p %63 : vector<8x128xf32>
    %65 = arith.addf %54, %64 : vector<8x128xf32>
    %66 = arith.select %57, %59, %65 : vector<8x128xi1>, vector<8x128xf32>
    %cst_44 = arith.constant 0.000000e+00 : f32
    %67 = vector.broadcast %cst_44 : f32 to vector<8x128xf32>
    %68 = arith.subf %67, %66 : vector<8x128xf32>
    %cst_45 = arith.constant 2.30258512 : f32
    %69 = vector.broadcast %cst_45 : f32 to vector<8x128xf32>
    %70 = arith.addf %69, %68 : vector<8x128xf32>
    %71 = math.exp %70 : vector<8x128xf32>
    %72 = arith.mulf %71, %41 : vector<8x128xf32>
    %73 = arith.addf %50, %72 : vector<8x128xf32>
    %74 = arith.negf %73 : vector<8x128xf32>
    %75 = math.exp %74 : vector<8x128xf32>
    %cst_46 = arith.constant 1.000000e+00 : f32
    %76 = vector.broadcast %cst_46 : f32 to vector<8x128xf32>
    %77 = arith.addf %76, %75 : vector<8x128xf32>
    %78 = arith.divf %76, %77 : vector<8x128xf32>
    %c2_47 = arith.constant 2 : index
    %c0_48 = arith.constant 0 : index
    %c0_49 = arith.constant 0 : index
    %79 = vector.load %arg2[%c2_47, %c0_48, %c0_49] : memref<3x8x128xf32, #tpu.memory_space<vmem>>, vector<1x8x128xf32>
    %80 = vector.shape_cast %79 : vector<1x8x128xf32> to vector<8x128xf32>
    %81 = vector.shape_cast %78 : vector<8x128xf32> to vector<1x8x128xf32>
    tpu.vector_store %arg2[%c2_47, %c0_48, %c0_49], %81 {strides = array<i32>} : memref<3x8x128xf32, #tpu.memory_space<vmem>>, vector<1x8x128xf32>,
    %82 = arith.mulf %41, %41 : vector<8x128xf32>
    %cst_50 = arith.constant -5.000000e-01 : f32
    %83 = vector.broadcast %cst_50 : f32 to vector<8x128xf32>
    %84 = arith.mulf %83, %82 : vector<8x128xf32>
    %85 = arith.addf %35, %84 : vector<8x128xf32>
    %86 = arith.subf %85, %70 : vector<8x128xf32>
    %87 = vector.shape_cast %86 : vector<8x128xf32> to vector<1x8x128xf32>
    %cst_51 = arith.constant dense<0.000000e+00> : vector<1xf32>
    %88 = vector.multi_reduction <add>, %87, %cst_51 [1, 2] : vector<1x8x128xf32> to vector<1xf32>
    %89 = vector.shape_cast %88 : vector<1xf32> to vector<1x1x1xf32>
    %90 = vector.extract %89[0, 0, 0] : f32 from vector<1x1x1xf32>
    %91 = vector.broadcast %90 : f32 to vector<1x1xf32>
    %cst_52 = arith.constant 2822.97925 : f32
    %92 = vector.broadcast %cst_52 : f32 to vector<1x1xf32>
    %93 = arith.subf %91, %92 : vector<1x1xf32>
    %c0_53 = arith.constant 0 : index
    %c0_54 = arith.constant 0 : index
    %94 = vector.load %arg3[%c0_53, %c0_54] : memref<1x1xf32, #tpu.memory_space<vmem>>, vector<1x1xf32>
    tpu.vector_store %arg3[%c0_53, %c0_54], %93 {strides = array<i32>} : memref<1x1xf32, #tpu.memory_space<vmem>>, vector<1x1xf32>,
    return
  }
}

</mosaic_0001>

<llo_original>
// kernel: _vi_fused_forward.1
$region0: #{_vi_fused_forward.1}
  #allocation0 [shape = 'u32[]', space=smem, size = 0x4, offset = 0x4, fixed_abs, tag = 'smem constant byte address 0x4 - core index']
  #allocation1 [shape = 'u32[144,128]{1,0:T(1,128)}', space=vmem, size = 0x12000, scoped, tag = 'internal scratch']
  %s0 = inlined_call_operand.vmem [shape: f32[3,2,8,128], index: 0, kind: input, shape index: {}]
  %s1 = inlined_call_operand.vmem [shape: f32[3,8,128], index: 1, kind: input, shape index: {}]
  %s2 = inlined_call_operand.hbm [shape: f32[3,8,128], index: 2, kind: output, shape index: {0}]
  %s3 = inlined_call_operand.hbm [shape: f32[1,1], index: 3, kind: output, shape index: {1}]
  %4 = xla_tuple %s2, %s3
  %s5 = sld [smem:[#allocation0]]
  $region26: #{_vi_fused_forward.1} parent=0
    _
  %s7 = ssub.s32 1, %s5
  %s8 = scalar_select 0, %s7, %s5
  $region1: #{_vi_fused_forward.1} parent=0
    #allocation2 [shape = 'u8[12288]{0}', space=vmem, size = 0x3000, scoped, tag = 'output window, operand 0, single buffered']
    #allocation3 [shape = 's32[1]{0}', space=sflag, size = 0x4, scoped, tag = 'scoped memory for _vi_fused_forward.1']
    #allocation4 [shape = 'u8[512]{0}', space=vmem, size = 0x400, scoped, tag = 'output window, operand 1, single buffered']
    #allocation5 [shape = 's32[1]{0}', space=sflag, size = 0x4, scoped, tag = 'scoped memory for _vi_fused_forward.1']
    %9 = vsyncpa [#allocation3], 0
    %10 = vsyncpa [#allocation5], 0
    // Predicated region
    $region2: #{_vi_fused_forward.1} parent=1 // pred_check
      _
    $region3: #{_vi_fused_forward.1} parent=1 // pred_check_branch
      %12 = sbr.rel (0) target = $region5
    $region4: #{_vi_fused_forward.1} parent=1 // pred_region
      _
    $region5: #{_vi_fused_forward.1} parent=1 // pred_fallthru
      _
    // Predicated region
    $region6: #{_vi_fused_forward.1} parent=1 // pred_check
      _
    $region7: #{_vi_fused_forward.1} parent=1 // pred_check_branch
      %14 = sbr.rel (0) target = $region9
    $region8: #{_vi_fused_forward.1} parent=1 // pred_region
      _
    $region9: #{_vi_fused_forward.1} parent=1 // pred_fallthru
      _
    %v15 = vld [vmem:[%s0] sm:$0xff]
    %s16 = scalar_lea.vmem %s0, 8
    %v17 = vld [vmem:[%s16] sm:$0xff]
    %v18 = vld [vmem:[%s1] sm:$0xff]
    %v19 = vmul.f32 %v17, 1.442695
    %v20 = vpow.pop %v19
    %v21 = vmul.f32 %v20, %v18
    %v22 = vadd.f32 %v15, %v21
    %23 = vst [vmem:[#allocation2] sm:$0xff] %v22
    %v24 = vmul.f32 %v18, %v18
    %v25 = vmul.f32 %v24, -0.5
    %v26 = vadd.f32 %v25, 0.0
    %v27 = vsub.f32 %v26, %v17
    %s28 = scalar_lea.vmem %s0, 16
    %v29 = vld [vmem:[%s28] sm:$0xff]
    %s30 = scalar_lea.vmem %s0, 24
    %v31 = vld [vmem:[%s30] sm:$0xff]
    %s32 = scalar_lea.vmem %s1, 8
    %v33 = vld [vmem:[%s32] sm:$0xff]
    %v34 = vmul.f32 %v31, 1.442695
    %v35 = vpow.pop %v34
    %v36 = vmul.f32 %v35, %v33
    %v37 = vadd.f32 %v29, %v36
    %v38 = vmul.f32 %v37, 1.442695
    %v39 = vpow.pop %v38
    %s40 = scalar_lea.vmem [#allocation2], 8
    %41 = vst [vmem:[%s40] sm:$0xff] %v39
    %v42 = vmul.f32 %v33, %v33
    %v43 = vmul.f32 %v42, -0.5
    %v44 = vadd.f32 %v27, %v43
    %v45 = vsub.f32 %v44, %v31
    %s46 = scalar_lea.vmem %s0, 32
    %v47 = vld [vmem:[%s46] sm:$0xff]
    %s48 = scalar_lea.vmem %s0, 40
    %v49 = vld [vmem:[%s48] sm:$0xff]
    %s50 = scalar_lea.vmem %s1, 16
    %v51 = vld [vmem:[%s50] sm:$0xff]
    %v52 = vxor.u32 %v47, 2147483648
    %v53 = vmul.f32 %v52, 1.442695
    %v54 = vpow.pop %v53
    %v55 = vadd.f32 %v54, 1.0
    %v56 = vrcp.pop %v55
    %v57 = vmul.f32 1.0, %v56
    %v58 = vmul.f32 %v57, 20.0
    %v59 = vsub.f32 %v58, 10.0
    %v60 = vsub.f32 0.0, %v49
    %v61 = vmax.f32 %v60, 0.0
    %vm62 = vcmp.ne.f32.partialorder %v60, %v60
    %v63 = vadd.f32 %v60, 0.0
    %v64 = vand.u32 2147483647, %v60
    %v65 = vsub.f32 0.0, %v64
    %v66 = vmul.f32 %v65, 1.442695
    %v67 = vpow.pop %v66
    %v68 = vadd.f32 %v67, 1.0
    %v69 = vlog2.pop %v68
    %v70 = vmul.f32 %v69, 0.6931472
    %v71 = vmul.f32 -0.5, %v67
    %v72 = vadd.f32 %v71, 1.0
    %v73 = vmul.f32 %v72, %v67
    %v74 = vand.u32 2147483647, %v67
    %vm75 = vcmp.lt.f32.partialorder %v74, 0.0004427343
    %v76 = vsel %vm75, %v73, %v70
    %v77 = vadd.f32 %v61, %v76
    %v78 = vsel %vm62, %v63, %v77
    %v79 = vsub.f32 0.0, %v78
    %v80 = vadd.f32 %v79, 2.3025851
    %v81 = vmul.f32 %v80, 1.442695
    %v82 = vpow.pop %v81
    %v83 = vmul.f32 %v82, %v51
    %v84 = vadd.f32 %v59, %v83
    %v85 = vxor.u32 %v84, 2147483648
    %v86 = vmul.f32 %v85, 1.442695
    %v87 = vpow.pop %v86
    %v88 = vadd.f32 %v87, 1.0
    %v89 = vrcp.pop %v88
    %v90 = vmul.f32 1.0, %v89
    %s91 = scalar_lea.vmem [#allocation2], 16
    %92 = vst [vmem:[%s91] sm:$0xff] %v90
    %v93 = vmul.f32 %v51, %v51
    %v94 = vmul.f32 %v93, -0.5
    %v95 = vadd.f32 %v45, %v94
    %v96 = vsub.f32 %v95, %v80
    %97 = vadd.xlane.f32.xlu0 %v96
    %v98 = vpop.xlane.xlu0 %97
    %v99 = vrot.slane %v98, 4
    %v100 = vadd.f32 %v98, %v99
    %v101 = vrot.slane %v100, 2
    %v102 = vadd.f32 %v100, %v101
    %v103 = vrot.slane %v102, 1
    %v104 = vadd.f32 %v102, %v103
    %s105 = vtos %v104
    %v106 = vstv %s105
    %v107 = vsub.f32 %v106, 2822.9792
    %vm108 = vcmask 0
    %109 = vst.msk [vmem:[#allocation4] sm:$0x1] %vm108, %v107
    // Predicated region
    $region10: #{_vi_fused_forward.1} parent=1 // pred_check
      _
    $region11: #{_vi_fused_forward.1} parent=1 // pred_check_branch
      %111 = sbr.rel (0) target = $region13
    $region12: #{_vi_fused_forward.1} parent=1 // pred_region
      %s113 = ssub.s32 384, 384
      %114 = vsyncadd [#allocation3], %s113
      %s115 = sshll.u32 [#allocation2], 4
      %s116 = int_to_ptr.vmem [resolvable:$true] %s115
      %121 = dma.vmem_to_hbm [thread:$0]  %s116, 384, %s2, [#allocation3], 128, 128, 8
    $region13: #{_vi_fused_forward.1} parent=1 // pred_fallthru
      _
    // Predicated region
    $region14: #{_vi_fused_forward.1} parent=1 // pred_check
      _
    $region15: #{_vi_fused_forward.1} parent=1 // pred_check_branch
      %123 = sbr.rel (0) target = $region17
    $region16: #{_vi_fused_forward.1} parent=1 // pred_region
      %s125 = ssub.s32 16, 16
      %126 = vsyncadd [#allocation5], %s125
      %s128 = sshll.u32 [#allocation4], 4
      %s129 = int_to_ptr.vmem [resolvable:$true] %s128
      %131 = dma.vmem_to_hbm [thread:$0]  %s129, 16, %s3, [#allocation5]
    $region17: #{_vi_fused_forward.1} parent=1 // pred_fallthru
      _
    // Predicated region
    $region18: #{_vi_fused_forward.1} parent=1 // pred_check
      _
    $region19: #{_vi_fused_forward.1} parent=1 // pred_check_branch
      %133 = sbr.rel (0) target = $region21
    $region20: #{_vi_fused_forward.1} parent=1 // pred_region
      %134 = dma.done [#allocation3], 384
    $region21: #{_vi_fused_forward.1} parent=1 // pred_fallthru
      _
    // Predicated region
    $region22: #{_vi_fused_forward.1} parent=1 // pred_check
      _
    $region23: #{_vi_fused_forward.1} parent=1 // pred_check_branch
      %136 = sbr.rel (0) target = $region25
    $region24: #{_vi_fused_forward.1} parent=1 // pred_region
      %137 = dma.done [#allocation5], 16
    $region25: #{_vi_fused_forward.1} parent=1 // pred_fallthru
      _
    %138 = vsyncpa [#allocation3], 1
    %139 = vsyncpa [#allocation5], 1

</llo_original>
